<compile_context>
chip_gen: v7x
topology: tpu7x:2x2x1
jax: 0.10.0
libtpu: 0.0.40
codegen_flags: <defaults>
</compile_context>

<pallas_src>
import functools

import jax
import jax.numpy as jnp
from jax.experimental import pallas as pl
from jax.experimental.pallas import tpu as pltpu

_TARGET_STEP_BYTES = 16 * 1024 * 1024  # in+out bytes resident per grid step


def _geg_kernel(x_ref, o_ref, *, n_freqs: int, alpha: float):
    # x_ref: (block_rows, lanes) f32      -- fully (8,128)-tiled, dense vregs
    # o_ref: (n_freqs, block_rows, lanes) -- lane-dense slab, one slice per order
    x = x_ref[...]

    # c_1 = 2*alpha*x
    c_prev1 = (2.0 * alpha) * x
    o_ref[0] = c_prev1.astype(o_ref.dtype)

    if n_freqs >= 2:
        c_prev2 = jnp.ones_like(x)  # c_0
        # Static polynomial order -> unrolled; only x, c_prev1, c_prev2 live.
        for i in range(2, n_freqs + 1):
            a_i = (2.0 * i - 2.0 + 2.0 * alpha) / float(i)   # 1/i folded in
            b_i = (-float(i) + 2.0 - 2.0 * alpha) / float(i)
            t = x * c_prev1                    # shared product
            c_i = a_i * t + b_i * c_prev2      # mul + fma on fma-capable parts
            o_ref[i - 1] = c_i.astype(o_ref.dtype)
            c_prev2, c_prev1 = c_prev1, c_i


def _pick_vmem_limit():
    """Per-generation VMEM limit: 64 MiB on 128-MiB parts, 48 MiB on v7x-class."""
    cap = 64 * 1024 * 1024
    try:
        cap = int(getattr(pltpu.get_tpu_info(), "vmem_capacity_bytes", cap) or cap)
    except Exception:
        pass
    return (64 if cap >= 96 * 1024 * 1024 else 48) * 1024 * 1024


def geg_embedding(x, n_freqs: int, alpha: float = 0.5, *,
                  layout: str = "rows", lanes: int | None = None,
                  block_rows: int | None = None, out_dtype=jnp.float32):
    """Gegenbauer positional embedding.

    x: any shape with N total elements (e.g. (N,) or (N, 1)).
    layout="rows": returns (N, n_freqs), matching the PyTorch module.
    layout="slab": returns the producer layout (n_freqs, R, lanes) where flat
        element index n = r*lanes + l (entries with n >= N are padding).  This
        skips the extra HBM re-layout pass entirely; use it when the consumer
        can read the slab (e.g. fuse it into the following matmul).
    """
    x_flat = jnp.asarray(x, jnp.float32).reshape(-1)
    n = x_flat.shape[0]
    out_dtype = jnp.dtype(out_dtype)
    if n_freqs < 1:
        return jnp.zeros((n, 0), out_dtype)

    out_isz = out_dtype.itemsize
    sub = max(8, 32 // out_isz)          # sublane multiple: 8 (f32), 16 (bf16), 32 (8-bit)

    # Lane width: shrink for small problems so padding stays small.
    if lanes is None:
        lanes = 512
        while lanes > 128 and -(-n // lanes) < 4 * sub:
            lanes //= 2
    assert lanes % 128 == 0, "lanes must be a multiple of 128"

    r_total = -(-n // lanes)             # ceil(n / lanes)

    if block_rows is None:
        # Rows per grid step from the ~16 MiB in+out budget ...
        step_row_bytes = n_freqs * lanes * out_isz + lanes * 4
        br = max(sub, (_TARGET_STEP_BYTES // step_row_bytes) // sub * sub)
        # ... but keep >= ~4 grid steps (megacore split on v7x) ...
        cap4 = -(-r_total // 4)
        cap4 = max(sub, -(-cap4 // sub) * sub)
        # ... and never bigger than the (padded) problem itself.
        cap_all = max(sub, -(-r_total // sub) * sub)
        block_rows = max(sub, min(br, cap4, cap_all))
    assert block_rows % sub == 0, (block_rows, sub)

    # Pad the flat input so R is a multiple of block_rows (ragged tail).
    r_pad = -(-r_total // block_rows) * block_rows
    n_pad = r_pad * lanes
    x2d = jnp.pad(x_flat, (0, n_pad - n)).reshape(r_pad, lanes)

    grid = (r_pad // block_rows,)
    kernel = functools.partial(_geg_kernel, n_freqs=int(n_freqs), alpha=float(alpha))

    out3d = pl.pallas_call(
        kernel,
        out_shape=jax.ShapeDtypeStruct((n_freqs, r_pad, lanes), out_dtype),
        grid_spec=pltpu.PrefetchScalarGridSpec(
            num_scalar_prefetch=0,
            grid=grid,
            in_specs=[pl.BlockSpec((block_rows, lanes), lambda i: (i, 0))],
            out_specs=pl.BlockSpec((n_freqs, block_rows, lanes),
                                   lambda i: (0, i, 0)),
        ),
        compiler_params=pltpu.CompilerParams(
            dimension_semantics=("parallel",),        # splits across v7x's 2 TCs
            vmem_limit_bytes=_pick_vmem_limit(),
        ),
    )(x2d)

    if layout == "slab":
        return out3d

    # layout == "rows": drop block padding, then re-layout to (N, n_freqs).
    # (This XLA transpose is the remaining HBM cost; fusion-capable consumers
    #  should use layout="slab" instead.)
    out = out3d[:, :r_total, :]
    out = out.transpose(1, 2, 0).reshape(r_total * lanes, n_freqs)[:n]
    return out


def _geg_reference(x, n_freqs, alpha=0.5):
    """Pure-JAX reference mirroring the PyTorch forward (divide-by-i form)."""
    x_in = jnp.asarray(x, jnp.float32).reshape(-1)
    n = x_in.shape[0]
    c = [jnp.ones((n,), jnp.float32), 2.0 * alpha * x_in]
    for i in range(2, n_freqs + 1):
        c_i = ((2 * i - 2 + 2.0 * alpha) * x_in * c[i - 1]
               + (-i + 2 - 2.0 * alpha) * c[i - 2]) / i
        c.append(c_i)
    return jnp.stack(c[1:], axis=-1)  # (n, n_freqs)


if __name__ == "__main__":
    key = jax.random.PRNGKey(0)
    k1, k2 = jax.random.split(key)

    # Config 1: typical positional-embedding use; N not a multiple of the tile.
    N, NF, ALPHA = 300, 8, 0.5
    x = jax.random.uniform(k1, (N, 1), jnp.float32, minval=-1.0, maxval=1.0)

    out = jax.block_until_ready(geg_embedding(x, NF, ALPHA))
    ref = _geg_reference(x, NF, ALPHA)
    assert out.shape == (N, NF)
    assert jnp.allclose(out, ref, atol=1e-5, rtol=1e-5)

    # Config 2: different N_freqs / alpha / 1-D input (exercises padding paths).
    N2, NF2, ALPHA2 = 77, 5, 1.0
    x2 = jax.random.uniform(k2, (N2,), jnp.float32, minval=-1.0, maxval=1.0)
    out2 = jax.block_until_ready(geg_embedding(x2, NF2, ALPHA2))
    ref2 = _geg_reference(x2, NF2, ALPHA2)
    assert out2.shape == (N2, NF2)
    assert jnp.allclose(out2, ref2, atol=1e-5, rtol=1e-5)

    # bf16 output path (halves HBM writeback; block_rows auto-bumps to x16).
    out_bf16 = jax.block_until_ready(
        geg_embedding(x, NF, ALPHA, out_dtype=jnp.bfloat16))
    assert out_bf16.dtype == jnp.bfloat16
    assert jnp.allclose(out_bf16.astype(jnp.float32), ref, atol=5e-2, rtol=5e-2)

    # Slab layout (zero extra HBM passes, for fusion-capable consumers).
    slab = jax.block_until_ready(geg_embedding(x, NF, ALPHA, layout="slab"))
    nf_, rp_, ln_ = slab.shape
    re = slab.transpose(1, 2, 0).reshape(rp_ * ln_, nf_)[:N]
    assert jnp.allclose(re, ref, atol=1e-5, rtol=1e-5)

    print("KERNEL_OK")
</pallas_src>

<mosaic_0001>
module attributes {stable_mosaic.version = 11 : i64} {
  func.func @_geg_kernel(%arg0: i32, %arg1: memref<8x128xf32, #tpu.memory_space<vmem>>, %arg2: memref<8x8x128xf32, #tpu.memory_space<vmem>>) attributes {dimension_semantics = [#tpu.dimension_semantics<parallel>], iteration_bounds = array<i64: 1>, scalar_prefetch = 0 : i64, scratch_operands = 0 : i64, tpu.core_type = #tpu.core_type<tc>, window_params = [{transform_indices = @transform_0, window_bounds = array<i64: 8, 128>}, {transform_indices = @transform_1, window_bounds = array<i64: 8, 8, 128>}]} {
    %c0 = arith.constant 0 : index
    %c0_0 = arith.constant 0 : index
    %0 = vector.load %arg1[%c0, %c0_0] : memref<8x128xf32, #tpu.memory_space<vmem>>, vector<8x128xf32>
    %cst = arith.constant 1.000000e+00 : f32
    %1 = vector.broadcast %cst : f32 to vector<8x128xf32>
    %2 = arith.mulf %1, %0 : vector<8x128xf32>
    %c0_1 = arith.constant 0 : index
    %c0_2 = arith.constant 0 : index
    %c0_3 = arith.constant 0 : index
    %3 = vector.load %arg2[%c0_1, %c0_2, %c0_3] : memref<8x8x128xf32, #tpu.memory_space<vmem>>, vector<1x8x128xf32>
    %4 = vector.shape_cast %3 : vector<1x8x128xf32> to vector<8x128xf32>
    %5 = vector.shape_cast %2 : vector<8x128xf32> to vector<1x8x128xf32>
    tpu.vector_store %arg2[%c0_1, %c0_2, %c0_3], %5 {strides = array<i32>} : memref<8x8x128xf32, #tpu.memory_space<vmem>>, vector<1x8x128xf32>,
    %cst_4 = arith.constant 1.000000e+00 : f32
    %6 = vector.broadcast %cst_4 : f32 to vector<8x128xf32>
    %7 = arith.mulf %0, %2 : vector<8x128xf32>
    %cst_5 = arith.constant 1.500000e+00 : f32
    %8 = vector.broadcast %cst_5 : f32 to vector<8x128xf32>
    %9 = arith.mulf %8, %7 : vector<8x128xf32>
    %cst_6 = arith.constant -5.000000e-01 : f32
    %10 = vector.broadcast %cst_6 : f32 to vector<8x128xf32>
    %11 = arith.mulf %10, %6 : vector<8x128xf32>
    %12 = arith.addf %9, %11 : vector<8x128xf32>
    %c1 = arith.constant 1 : index
    %c0_7 = arith.constant 0 : index
    %c0_8 = arith.constant 0 : index
    %13 = vector.load %arg2[%c1, %c0_7, %c0_8] : memref<8x8x128xf32, #tpu.memory_space<vmem>>, vector<1x8x128xf32>
    %14 = vector.shape_cast %13 : vector<1x8x128xf32> to vector<8x128xf32>
    %15 = vector.shape_cast %12 : vector<8x128xf32> to vector<1x8x128xf32>
    tpu.vector_store %arg2[%c1, %c0_7, %c0_8], %15 {strides = array<i32>} : memref<8x8x128xf32, #tpu.memory_space<vmem>>, vector<1x8x128xf32>,
    %16 = arith.mulf %0, %12 : vector<8x128xf32>
    %cst_9 = arith.constant 1.66666663 : f32
    %17 = vector.broadcast %cst_9 : f32 to vector<8x128xf32>
    %18 = arith.mulf %17, %16 : vector<8x128xf32>
    %cst_10 = arith.constant -0.666666686 : f32
    %19 = vector.broadcast %cst_10 : f32 to vector<8x128xf32>
    %20 = arith.mulf %19, %2 : vector<8x128xf32>
    %21 = arith.addf %18, %20 : vector<8x128xf32>
    %c2 = arith.constant 2 : index
    %c0_11 = arith.constant 0 : index
    %c0_12 = arith.constant 0 : index
    %22 = vector.load %arg2[%c2, %c0_11, %c0_12] : memref<8x8x128xf32, #tpu.memory_space<vmem>>, vector<1x8x128xf32>
    %23 = vector.shape_cast %22 : vector<1x8x128xf32> to vector<8x128xf32>
    %24 = vector.shape_cast %21 : vector<8x128xf32> to vector<1x8x128xf32>
    tpu.vector_store %arg2[%c2, %c0_11, %c0_12], %24 {strides = array<i32>} : memref<8x8x128xf32, #tpu.memory_space<vmem>>, vector<1x8x128xf32>,
    %25 = arith.mulf %0, %21 : vector<8x128xf32>
    %cst_13 = arith.constant 1.750000e+00 : f32
    %26 = vector.broadcast %cst_13 : f32 to vector<8x128xf32>
    %27 = arith.mulf %26, %25 : vector<8x128xf32>
    %cst_14 = arith.constant -7.500000e-01 : f32
    %28 = vector.broadcast %cst_14 : f32 to vector<8x128xf32>
    %29 = arith.mulf %28, %12 : vector<8x128xf32>
    %30 = arith.addf %27, %29 : vector<8x128xf32>
    %c3 = arith.constant 3 : index
    %c0_15 = arith.constant 0 : index
    %c0_16 = arith.constant 0 : index
    %31 = vector.load %arg2[%c3, %c0_15, %c0_16] : memref<8x8x128xf32, #tpu.memory_space<vmem>>, vector<1x8x128xf32>
    %32 = vector.shape_cast %31 : vector<1x8x128xf32> to vector<8x128xf32>
    %33 = vector.shape_cast %30 : vector<8x128xf32> to vector<1x8x128xf32>
    tpu.vector_store %arg2[%c3, %c0_15, %c0_16], %33 {strides = array<i32>} : memref<8x8x128xf32, #tpu.memory_space<vmem>>, vector<1x8x128xf32>,
    %34 = arith.mulf %0, %30 : vector<8x128xf32>
    %cst_17 = arith.constant 1.800000e+00 : f32
    %35 = vector.broadcast %cst_17 : f32 to vector<8x128xf32>
    %36 = arith.mulf %35, %34 : vector<8x128xf32>
    %cst_18 = arith.constant -8.000000e-01 : f32
    %37 = vector.broadcast %cst_18 : f32 to vector<8x128xf32>
    %38 = arith.mulf %37, %21 : vector<8x128xf32>
    %39 = arith.addf %36, %38 : vector<8x128xf32>
    %c4 = arith.constant 4 : index
    %c0_19 = arith.constant 0 : index
    %c0_20 = arith.constant 0 : index
    %40 = vector.load %arg2[%c4, %c0_19, %c0_20] : memref<8x8x128xf32, #tpu.memory_space<vmem>>, vector<1x8x128xf32>
    %41 = vector.shape_cast %40 : vector<1x8x128xf32> to vector<8x128xf32>
    %42 = vector.shape_cast %39 : vector<8x128xf32> to vector<1x8x128xf32>
    tpu.vector_store %arg2[%c4, %c0_19, %c0_20], %42 {strides = array<i32>} : memref<8x8x128xf32, #tpu.memory_space<vmem>>, vector<1x8x128xf32>,
    %43 = arith.mulf %0, %39 : vector<8x128xf32>
    %cst_21 = arith.constant 1.83333337 : f32
    %44 = vector.broadcast %cst_21 : f32 to vector<8x128xf32>
    %45 = arith.mulf %44, %43 : vector<8x128xf32>
    %cst_22 = arith.constant -0.833333313 : f32
    %46 = vector.broadcast %cst_22 : f32 to vector<8x128xf32>
    %47 = arith.mulf %46, %30 : vector<8x128xf32>
    %48 = arith.addf %45, %47 : vector<8x128xf32>
    %c5 = arith.constant 5 : index
    %c0_23 = arith.constant 0 : index
    %c0_24 = arith.constant 0 : index
    %49 = vector.load %arg2[%c5, %c0_23, %c0_24] : memref<8x8x128xf32, #tpu.memory_space<vmem>>, vector<1x8x128xf32>
    %50 = vector.shape_cast %49 : vector<1x8x128xf32> to vector<8x128xf32>
    %51 = vector.shape_cast %48 : vector<8x128xf32> to vector<1x8x128xf32>
    tpu.vector_store %arg2[%c5, %c0_23, %c0_24], %51 {strides = array<i32>} : memref<8x8x128xf32, #tpu.memory_space<vmem>>, vector<1x8x128xf32>,
    %52 = arith.mulf %0, %48 : vector<8x128xf32>
    %cst_25 = arith.constant 1.85714281 : f32
    %53 = vector.broadcast %cst_25 : f32 to vector<8x128xf32>
    %54 = arith.mulf %53, %52 : vector<8x128xf32>
    %cst_26 = arith.constant -0.857142865 : f32
    %55 = vector.broadcast %cst_26 : f32 to vector<8x128xf32>
    %56 = arith.mulf %55, %39 : vector<8x128xf32>
    %57 = arith.addf %54, %56 : vector<8x128xf32>
    %c6 = arith.constant 6 : index
    %c0_27 = arith.constant 0 : index
    %c0_28 = arith.constant 0 : index
    %58 = vector.load %arg2[%c6, %c0_27, %c0_28] : memref<8x8x128xf32, #tpu.memory_space<vmem>>, vector<1x8x128xf32>
    %59 = vector.shape_cast %58 : vector<1x8x128xf32> to vector<8x128xf32>
    %60 = vector.shape_cast %57 : vector<8x128xf32> to vector<1x8x128xf32>
    tpu.vector_store %arg2[%c6, %c0_27, %c0_28], %60 {strides = array<i32>} : memref<8x8x128xf32, #tpu.memory_space<vmem>>, vector<1x8x128xf32>,
    %61 = arith.mulf %0, %57 : vector<8x128xf32>
    %cst_29 = arith.constant 1.875000e+00 : f32
    %62 = vector.broadcast %cst_29 : f32 to vector<8x128xf32>
    %63 = arith.mulf %62, %61 : vector<8x128xf32>
    %cst_30 = arith.constant -8.750000e-01 : f32
    %64 = vector.broadcast %cst_30 : f32 to vector<8x128xf32>
    %65 = arith.mulf %64, %48 : vector<8x128xf32>
    %66 = arith.addf %63, %65 : vector<8x128xf32>
    %c7 = arith.constant 7 : index
    %c0_31 = arith.constant 0 : index
    %c0_32 = arith.constant 0 : index
    %67 = vector.load %arg2[%c7, %c0_31, %c0_32] : memref<8x8x128xf32, #tpu.memory_space<vmem>>, vector<1x8x128xf32>
    %68 = vector.shape_cast %67 : vector<1x8x128xf32> to vector<8x128xf32>
    %69 = vector.shape_cast %66 : vector<8x128xf32> to vector<1x8x128xf32>
    tpu.vector_store %arg2[%c7, %c0_31, %c0_32], %69 {strides = array<i32>} : memref<8x8x128xf32, #tpu.memory_space<vmem>>, vector<1x8x128xf32>,
    return
  }
  func.func @transform_0(%arg0: i32) -> (i32, i32) {
    %c0_i32 = arith.constant 0 : i32
    %c0_i32_0 = arith.constant 0 : i32
    return %arg0, %c0_i32 : i32, i32
  }
  func.func @transform_1(%arg0: i32) -> (i32, i32, i32) {
    %c0_i32 = arith.constant 0 : i32
    %c0_i32_0 = arith.constant 0 : i32
    %c0_i32_1 = arith.constant 0 : i32
    return %c0_i32, %arg0, %c0_i32_0 : i32, i32, i32
  }
}

</mosaic_0001>

<llo_original>
// kernel: tpu_custom_call.1
$region0: #{tpu_custom_call.1}
  #allocation0 [shape = 'u32[]', space=smem, size = 0x4, offset = 0x4, fixed_abs, tag = 'smem constant byte address 0x4 - core index']
  #allocation1 [shape = 'u32[144,128]{1,0:T(1,128)}', space=vmem, size = 0x12000, scoped, tag = 'internal scratch']
  %s0 = inlined_call_operand.hbm [shape: f32[8,128], index: 0, kind: input, shape index: {}]
  %s1 = inlined_call_operand.hbm [shape: f32[8,8,128], index: 1, kind: output, shape index: {}]
  %s2 = sld [smem:[#allocation0]]
  $region18: #{tpu_custom_call.1} parent=0
    _
  %s4 = ssub.s32 1, %s2
  %s5 = scalar_select 0, %s4, %s2
  $region1: #{tpu_custom_call.1} parent=0
    #allocation2 [shape = 'u8[4096]{0}', space=vmem, size = 0x1000, scoped, tag = 'input window, operand 0, single buffered']
    #allocation3 [shape = 's32[1]{0}', space=sflag, size = 0x4, scoped, tag = 'scoped memory for tpu_custom_call.1']
    #allocation4 [shape = 's32[1]{0}', space=sflag, size = 0x4, scoped, tag = 'scoped memory for tpu_custom_call.1']
    #allocation5 [shape = 'u8[32768]{0}', space=vmem, size = 0x8000, scoped, tag = 'output window, operand 0, single buffered']
    %6 = vsyncpa [#allocation3], 0
    %7 = vsyncpa [#allocation4], 0
    // Predicated region
    $region2: #{tpu_custom_call.1} parent=1 // pred_check
      _
    $region3: #{tpu_custom_call.1} parent=1 // pred_check_branch
      %9 = sbr.rel (0) target = $region5
    $region4: #{tpu_custom_call.1} parent=1 // pred_region
      %s11 = ssub.s32 128, 128
      %12 = vsyncadd [#allocation3], %s11
      %s14 = sshll.u32 [#allocation2], 4
      %s15 = int_to_ptr.vmem [resolvable:$true] %s14
      %17 = dma.hbm_to_vmem [thread:$0]  %s0, 128, %s15, [#allocation3]
    $region5: #{tpu_custom_call.1} parent=1 // pred_fallthru
      _
    // Predicated region
    $region6: #{tpu_custom_call.1} parent=1 // pred_check
      _
    $region7: #{tpu_custom_call.1} parent=1 // pred_check_branch
      %19 = sbr.rel (0) target = $region9
    $region8: #{tpu_custom_call.1} parent=1 // pred_region
      %20 = dma.done [#allocation3], 128
    $region9: #{tpu_custom_call.1} parent=1 // pred_fallthru
      _
    %v21 = vld [vmem:[#allocation2] sm:$0xff]
    %22 = vst [vmem:[#allocation5] sm:$0xff] %v21
    %v23 = vmul.f32 %v21, %v21
    %v24 = vmul.f32 %v23, 1.5
    %v25 = vadd.f32 %v24, -0.5
    %s26 = scalar_lea.vmem [#allocation5], 8
    %27 = vst [vmem:[%s26] sm:$0xff] %v25
    %v28 = vmul.f32 %v21, %v25
    %v29 = vmul.f32 %v28, 1.6666666
    %v30 = vmul.f32 %v21, -0.6666667
    %v31 = vadd.f32 %v29, %v30
    %s32 = scalar_lea.vmem [#allocation5], 16
    %33 = vst [vmem:[%s32] sm:$0xff] %v31
    %v34 = vmul.f32 %v21, %v31
    %v35 = vmul.f32 %v34, 1.75
    %v36 = vmul.f32 %v25, -0.75
    %v37 = vadd.f32 %v35, %v36
    %s38 = scalar_lea.vmem [#allocation5], 24
    %39 = vst [vmem:[%s38] sm:$0xff] %v37
    %v40 = vmul.f32 %v21, %v37
    %v41 = vmul.f32 %v40, 1.8
    %v42 = vmul.f32 %v31, -0.8
    %v43 = vadd.f32 %v41, %v42
    %s44 = scalar_lea.vmem [#allocation5], 32
    %45 = vst [vmem:[%s44] sm:$0xff] %v43
    %v46 = vmul.f32 %v21, %v43
    %v47 = vmul.f32 %v46, 1.8333334
    %v48 = vmul.f32 %v37, -0.8333333
    %v49 = vadd.f32 %v47, %v48
    %s50 = scalar_lea.vmem [#allocation5], 40
    %51 = vst [vmem:[%s50] sm:$0xff] %v49
    %v52 = vmul.f32 %v21, %v49
    %v53 = vmul.f32 %v52, 1.8571428
    %v54 = vmul.f32 %v43, -0.85714287
    %v55 = vadd.f32 %v53, %v54
    %s56 = scalar_lea.vmem [#allocation5], 48
    %57 = vst [vmem:[%s56] sm:$0xff] %v55
    %v58 = vmul.f32 %v21, %v55
    %v59 = vmul.f32 %v58, 1.875
    %v60 = vmul.f32 %v49, -0.875
    %v61 = vadd.f32 %v59, %v60
    %s62 = scalar_lea.vmem [#allocation5], 56
    %63 = vst [vmem:[%s62] sm:$0xff] %v61
    // Predicated region
    $region10: #{tpu_custom_call.1} parent=1 // pred_check
      _
    $region11: #{tpu_custom_call.1} parent=1 // pred_check_branch
      %65 = sbr.rel (0) target = $region13
    $region12: #{tpu_custom_call.1} parent=1 // pred_region
      %s67 = ssub.s32 1024, 1024
      %68 = vsyncadd [#allocation4], %s67
      %s69 = sshll.u32 [#allocation5], 4
      %s70 = int_to_ptr.vmem [resolvable:$true] %s69
      %75 = dma.vmem_to_hbm [thread:$0]  %s70, 1024, %s1, [#allocation4], 128, 128, 8
    $region13: #{tpu_custom_call.1} parent=1 // pred_fallthru
      _
    // Predicated region
    $region14: #{tpu_custom_call.1} parent=1 // pred_check
      _
    $region15: #{tpu_custom_call.1} parent=1 // pred_check_branch
      %77 = sbr.rel (0) target = $region17
    $region16: #{tpu_custom_call.1} parent=1 // pred_region
      %78 = dma.done [#allocation4], 1024
    $region17: #{tpu_custom_call.1} parent=1 // pred_fallthru
      _
    %79 = vsyncpa [#allocation3], 1
    %80 = vsyncpa [#allocation4], 1

</llo_original>
